<compile_context>
chip_gen: v6e
topology: v6e:2x2x1
jax: 0.10.0
libtpu: 0.0.40
codegen_flags: <defaults>
</compile_context>

<pallas_src>
import functools

import jax
import jax.numpy as jnp
from jax.experimental import pallas as pl
from jax.experimental.pallas import tpu as pltpu


def _conv_in_sqrt_median_kernel(im_ref, w_ref, o_ref, *, cout, eps):
    # im_ref: (1, Cin*K*K, HW)  im2col columns for one batch element (lane-dense)
    # w_ref:  (Cout, Cin*K*K)   fused conv weights
    # o_ref:  (1, 1, HW)        channel-median output (lane-dense)
    im = im_ref[0]                       # (Cin*K*K, HW)
    w = w_ref[...]                       # (Cout, Cin*K*K)
    hw = im.shape[1]

    # ---- Conv2d as a single fused MXU matmul (bias cancelled by InstanceNorm) ----
    acc = jnp.dot(w, im, preferred_element_type=jnp.float32)     # (Cout, HW)

    # ---- InstanceNorm2d (affine=False, biased variance, eps=1e-5) ----
    mean = jnp.mean(acc, axis=1, keepdims=True)
    centered = acc - mean
    var = jnp.mean(centered * centered, axis=1, keepdims=True)
    y = jnp.sqrt(centered * jax.lax.rsqrt(var + eps))            # NaN where value < 0

    # ---- torch.median(dim=1, keepdim=True).values ----
    # Lower median (index (Cout-1)//2 of the sorted channel slice); any NaN in a
    # slice -> NaN (torch.median semantics). NaNs are mapped to +inf for sorting
    # and the NaN result is re-applied afterwards.
    keys = jnp.where(jnp.isnan(y), jnp.float32(jnp.inf), y)      # (Cout, HW)

    row = jax.lax.broadcasted_iota(jnp.int32, (cout, hw), 0)
    parity = row % 2
    last = cout - 1
    # (is_left, is_right) masks for even / odd phases of the transposition sort.
    masks = [
        ((parity == 0) & (row < last), (parity == 1) & (row > 0)),
        ((parity == 1) & (row < last), (parity == 0) & (row > 0)),
    ]

    # Odd-even transposition sort along the channel (sublane) axis using full
    # (Cout, HW) vregs; neighbour rows fetched with sublane rolls (XLU slot).
    for p in range(cout):
        up = pltpu.roll(keys, shift=cout - 1, axis=0)            # keys[i+1]
        dn = pltpu.roll(keys, shift=1, axis=0)                   # keys[i-1]
        is_left, is_right = masks[p % 2]
        keys = jnp.where(is_left, jnp.minimum(keys, up),
                         jnp.where(is_right, jnp.maximum(keys, dn), keys))

    m = (cout - 1) // 2
    med = keys[m:m + 1, :]                                       # (1, HW)

    nan_count = jnp.sum(jnp.where(jnp.isnan(y), 1.0, 0.0),
                        axis=0, keepdims=True)                   # (1, HW)
    o_ref[0] = jnp.where(nan_count > 0.0, jnp.float32(jnp.nan), med)


def my_module_forward(x, w, b=None, *, padding=1):
    """x: (N, Cin, H, W) f32, w: (Cout, Cin, K, K) f32, b: (Cout,) f32 (unused, see below)."""
    N, Cin, H, W = x.shape
    Cout, _, K, _ = w.shape
    Ho = H + 2 * padding - K + 1
    Wo = W + 2 * padding - K + 1
    HW = Ho * Wo
    CKK = Cin * K * K

    # im2col in the wrapper (layout plumbing, not compute): (N, Cin*K*K, Ho*Wo),
    # rows ordered (cin, kh, kw) to match w.reshape(Cout, Cin*K*K).
    xp = jnp.pad(x, ((0, 0), (0, 0), (padding, padding), (padding, padding)))
    taps = [xp[:, :, kh:kh + Ho, kw:kw + Wo] for kh in range(K) for kw in range(K)]
    im = jnp.stack(taps, axis=2).reshape(N, CKK, HW).astype(jnp.float32)

    w_r = w.reshape(Cout, CKK).astype(jnp.float32)
    # NOTE: the conv bias `b` is intentionally NOT applied: InstanceNorm2d(affine=False)
    # removes any per-channel constant over HxW, so the bias has zero effect on the output.
    del b

    kernel = functools.partial(_conv_in_sqrt_median_kernel, cout=Cout, eps=1e-5)

    out_flat = pl.pallas_call(
        kernel,
        out_shape=jax.ShapeDtypeStruct((N, 1, HW), jnp.float32),
        grid=(N,),
        in_specs=[
            pl.BlockSpec((1, CKK, HW), lambda n: (n, 0, 0)),
            pl.BlockSpec((Cout, CKK), lambda n: (0, 0)),
        ],
        out_specs=pl.BlockSpec((1, 1, HW), lambda n: (n, 0, 0)),
        compiler_params=pltpu.CompilerParams(dimension_semantics=("parallel",)),
    )(im, w_r)

    return out_flat.reshape(N, 1, Ho, Wo)


if __name__ == "__main__":
    N, Cin, Cout, K, H, W = 2, 4, 8, 3, 16, 16

    key = jax.random.PRNGKey(0)
    kx, kw, kb = jax.random.split(key, 3)
    x = jax.random.normal(kx, (N, Cin, H, W), dtype=jnp.float32)
    w = jax.random.normal(kw, (Cout, Cin, K, K), dtype=jnp.float32) * 0.1
    b = jax.random.normal(kb, (Cout,), dtype=jnp.float32) * 0.1

    out = my_module_forward(x, w, b)
    jax.block_until_ready(out)
    assert out.shape == (N, 1, H, W), out.shape
    print("KERNEL_OK")
</pallas_src>

<mosaic_0001>
module attributes {stable_mosaic.version = 11 : i64} {
  func.func @_conv_in_sqrt_median_kernel(%arg0: i32, %arg1: memref<1x36x256xf32, #tpu.memory_space<vmem>>, %arg2: memref<8x36xf32, #tpu.memory_space<vmem>>, %arg3: memref<1x1x256xf32, #tpu.memory_space<vmem>>) attributes {dimension_semantics = [#tpu.dimension_semantics<parallel>], iteration_bounds = array<i64: 2>, scalar_prefetch = 0 : i64, scratch_operands = 0 : i64, tpu.core_type = #tpu.core_type<tc>, window_params = [{transform_indices = @transform_0, window_bounds = array<i64: 1, 36, 256>}, {pipeline_mode = #tpu.pipeline_mode<synchronous>, transform_indices = @transform_1, window_bounds = array<i64: 8, 36>}, {transform_indices = @transform_2, window_bounds = array<i64: 1, 1, 256>}]} {
    %c0 = arith.constant 0 : index
    %c0_0 = arith.constant 0 : index
    %c0_1 = arith.constant 0 : index
    %0 = vector.load %arg1[%c0, %c0_0, %c0_1] : memref<1x36x256xf32, #tpu.memory_space<vmem>>, vector<1x36x256xf32>
    %1 = vector.shape_cast %0 : vector<1x36x256xf32> to vector<36x256xf32>
    %c0_2 = arith.constant 0 : index
    %c0_3 = arith.constant 0 : index
    %2 = vector.load %arg2[%c0_2, %c0_3] : memref<8x36xf32, #tpu.memory_space<vmem>>, vector<8x36xf32>
    %cst = arith.constant dense<0.000000e+00> : vector<8x256xf32>
    %3 = tpu.matmul %2, %1, %cst {dimension_numbers = #tpu.dot_dimension_numbers<[1], [0], [0], [1], [0, 0, 1, 1], [], []>} : vector<8x36xf32>, vector<36x256xf32>, vector<8x256xf32> -> vector<8x256xf32>
    %cst_4 = arith.constant dense<0.000000e+00> : vector<8xf32>
    %4 = vector.multi_reduction <add>, %3, %cst_4 [1] : vector<8x256xf32> to vector<8xf32>
    %5 = vector.shape_cast %4 : vector<8xf32> to vector<8x1xf32>
    %cst_5 = arith.constant 2.560000e+02 : f32
    %6 = vector.broadcast %cst_5 : f32 to vector<8x1xf32>
    %7 = arith.divf %5, %6 : vector<8x1xf32>
    %8 = vector.broadcast %7 : vector<8x1xf32> to vector<8x256xf32>
    %9 = arith.subf %3, %8 : vector<8x256xf32>
    %10 = arith.mulf %9, %9 : vector<8x256xf32>
    %cst_6 = arith.constant dense<0.000000e+00> : vector<8xf32>
    %11 = vector.multi_reduction <add>, %10, %cst_6 [1] : vector<8x256xf32> to vector<8xf32>
    %12 = vector.shape_cast %11 : vector<8xf32> to vector<8x1xf32>
    %cst_7 = arith.constant 2.560000e+02 : f32
    %13 = vector.broadcast %cst_7 : f32 to vector<8x1xf32>
    %14 = arith.divf %12, %13 : vector<8x1xf32>
    %cst_8 = arith.constant 9.99999974E-6 : f32
    %15 = vector.broadcast %cst_8 : f32 to vector<8x1xf32>
    %16 = arith.addf %14, %15 : vector<8x1xf32>
    %17 = math.rsqrt %16 : vector<8x1xf32>
    %18 = vector.broadcast %17 : vector<8x1xf32> to vector<8x256xf32>
    %19 = arith.mulf %9, %18 : vector<8x256xf32>
    %20 = math.sqrt %19 : vector<8x256xf32>
    %21 = arith.cmpf one, %20, %20 : vector<8x256xf32>
    %cst_9 = arith.constant 0x7F800000 : f32
    %22 = vector.broadcast %cst_9 : f32 to vector<8x256xf32>
    %23 = arith.select %21, %22, %20 : vector<8x256xi1>, vector<8x256xf32>
    %24 = tpu.iota {dimensions = array<i32: 0>} : vector<8x256xi32>
    %c2_i32 = arith.constant 2 : i32
    %c0_i32 = arith.constant 0 : i32
    %25 = arith.cmpi eq, %c2_i32, %c0_i32 : i32
    %c1_i32 = arith.constant 1 : i32
    %26 = arith.select %25, %c1_i32, %c2_i32 : i32
    %27 = vector.broadcast %26 : i32 to vector<8x256xi32>
    %28 = arith.remsi %24, %27 : vector<8x256xi32>
    %c0_i32_10 = arith.constant 0 : i32
    %29 = vector.broadcast %c0_i32_10 : i32 to vector<8x256xi32>
    %30 = arith.cmpi ne, %28, %29 : vector<8x256xi32>
    %c0_i32_11 = arith.constant 0 : i32
    %31 = vector.broadcast %c0_i32_11 : i32 to vector<8x256xi32>
    %32 = arith.cmpi slt, %28, %31 : vector<8x256xi32>
    %c0_i32_12 = arith.constant 0 : i32
    %33 = arith.cmpi slt, %26, %c0_i32_12 : i32
    %34 = vector.broadcast %33 : i1 to vector<8x256xi1>
    %35 = vector.broadcast %34 : vector<8x256xi1> to vector<8x256xi1>
    %36 = arith.xori %32, %35 : vector<8x256xi1>
    %37 = arith.andi %36, %30 : vector<8x256xi1>
    %38 = vector.broadcast %26 : i32 to vector<8x256xi32>
    %39 = arith.addi %28, %38 : vector<8x256xi32>
    %40 = arith.select %37, %39, %28 : vector<8x256xi1>, vector<8x256xi32>
    %c0_i32_13 = arith.constant 0 : i32
    %41 = vector.broadcast %c0_i32_13 : i32 to vector<8x256xi32>
    %42 = arith.cmpi eq, %40, %41 : vector<8x256xi32>
    %c7_i32 = arith.constant 7 : i32
    %43 = vector.broadcast %c7_i32 : i32 to vector<8x256xi32>
    %44 = arith.cmpi slt, %24, %43 : vector<8x256xi32>
    %45 = arith.andi %42, %44 : vector<8x256xi1>
    %c1_i32_14 = arith.constant 1 : i32
    %46 = vector.broadcast %c1_i32_14 : i32 to vector<8x256xi32>
    %47 = arith.cmpi eq, %40, %46 : vector<8x256xi32>
    %c0_i32_15 = arith.constant 0 : i32
    %48 = vector.broadcast %c0_i32_15 : i32 to vector<8x256xi32>
    %49 = arith.cmpi sgt, %24, %48 : vector<8x256xi32>
    %50 = arith.andi %47, %49 : vector<8x256xi1>
    %c1_i32_16 = arith.constant 1 : i32
    %51 = vector.broadcast %c1_i32_16 : i32 to vector<8x256xi32>
    %52 = arith.cmpi eq, %40, %51 : vector<8x256xi32>
    %c7_i32_17 = arith.constant 7 : i32
    %53 = vector.broadcast %c7_i32_17 : i32 to vector<8x256xi32>
    %54 = arith.cmpi slt, %24, %53 : vector<8x256xi32>
    %55 = arith.andi %52, %54 : vector<8x256xi1>
    %c0_i32_18 = arith.constant 0 : i32
    %56 = vector.broadcast %c0_i32_18 : i32 to vector<8x256xi32>
    %57 = arith.cmpi eq, %40, %56 : vector<8x256xi32>
    %c0_i32_19 = arith.constant 0 : i32
    %58 = vector.broadcast %c0_i32_19 : i32 to vector<8x256xi32>
    %59 = arith.cmpi sgt, %24, %58 : vector<8x256xi32>
    %60 = arith.andi %57, %59 : vector<8x256xi1>
    %c7_i32_20 = arith.constant 7 : i32
    %61 = tpu.dynamic_rotate %23 by %c7_i32_20 dim 0 : vector<8x256xf32>, i32 -> vector<8x256xf32>
    %c1_i32_21 = arith.constant 1 : i32
    %62 = tpu.dynamic_rotate %23 by %c1_i32_21 dim 0 : vector<8x256xf32>, i32 -> vector<8x256xf32>
    %63 = arith.minimumf %23, %61 : vector<8x256xf32>
    %64 = arith.maximumf %23, %62 : vector<8x256xf32>
    %65 = arith.select %50, %64, %23 : vector<8x256xi1>, vector<8x256xf32>
    %66 = arith.select %45, %63, %65 : vector<8x256xi1>, vector<8x256xf32>
    %c7_i32_22 = arith.constant 7 : i32
    %67 = tpu.dynamic_rotate %66 by %c7_i32_22 dim 0 : vector<8x256xf32>, i32 -> vector<8x256xf32>
    %c1_i32_23 = arith.constant 1 : i32
    %68 = tpu.dynamic_rotate %66 by %c1_i32_23 dim 0 : vector<8x256xf32>, i32 -> vector<8x256xf32>
    %69 = arith.minimumf %66, %67 : vector<8x256xf32>
    %70 = arith.maximumf %66, %68 : vector<8x256xf32>
    %71 = arith.select %60, %70, %66 : vector<8x256xi1>, vector<8x256xf32>
    %72 = arith.select %55, %69, %71 : vector<8x256xi1>, vector<8x256xf32>
    %c7_i32_24 = arith.constant 7 : i32
    %73 = tpu.dynamic_rotate %72 by %c7_i32_24 dim 0 : vector<8x256xf32>, i32 -> vector<8x256xf32>
    %c1_i32_25 = arith.constant 1 : i32
    %74 = tpu.dynamic_rotate %72 by %c1_i32_25 dim 0 : vector<8x256xf32>, i32 -> vector<8x256xf32>
    %75 = arith.minimumf %72, %73 : vector<8x256xf32>
    %76 = arith.maximumf %72, %74 : vector<8x256xf32>
    %77 = arith.select %50, %76, %72 : vector<8x256xi1>, vector<8x256xf32>
    %78 = arith.select %45, %75, %77 : vector<8x256xi1>, vector<8x256xf32>
    %c7_i32_26 = arith.constant 7 : i32
    %79 = tpu.dynamic_rotate %78 by %c7_i32_26 dim 0 : vector<8x256xf32>, i32 -> vector<8x256xf32>
    %c1_i32_27 = arith.constant 1 : i32
    %80 = tpu.dynamic_rotate %78 by %c1_i32_27 dim 0 : vector<8x256xf32>, i32 -> vector<8x256xf32>
    %81 = arith.minimumf %78, %79 : vector<8x256xf32>
    %82 = arith.maximumf %78, %80 : vector<8x256xf32>
    %83 = arith.select %60, %82, %78 : vector<8x256xi1>, vector<8x256xf32>
    %84 = arith.select %55, %81, %83 : vector<8x256xi1>, vector<8x256xf32>
    %c7_i32_28 = arith.constant 7 : i32
    %85 = tpu.dynamic_rotate %84 by %c7_i32_28 dim 0 : vector<8x256xf32>, i32 -> vector<8x256xf32>
    %c1_i32_29 = arith.constant 1 : i32
    %86 = tpu.dynamic_rotate %84 by %c1_i32_29 dim 0 : vector<8x256xf32>, i32 -> vector<8x256xf32>
    %87 = arith.minimumf %84, %85 : vector<8x256xf32>
    %88 = arith.maximumf %84, %86 : vector<8x256xf32>
    %89 = arith.select %50, %88, %84 : vector<8x256xi1>, vector<8x256xf32>
    %90 = arith.select %45, %87, %89 : vector<8x256xi1>, vector<8x256xf32>
    %c7_i32_30 = arith.constant 7 : i32
    %91 = tpu.dynamic_rotate %90 by %c7_i32_30 dim 0 : vector<8x256xf32>, i32 -> vector<8x256xf32>
    %c1_i32_31 = arith.constant 1 : i32
    %92 = tpu.dynamic_rotate %90 by %c1_i32_31 dim 0 : vector<8x256xf32>, i32 -> vector<8x256xf32>
    %93 = arith.minimumf %90, %91 : vector<8x256xf32>
    %94 = arith.maximumf %90, %92 : vector<8x256xf32>
    %95 = arith.select %60, %94, %90 : vector<8x256xi1>, vector<8x256xf32>
    %96 = arith.select %55, %93, %95 : vector<8x256xi1>, vector<8x256xf32>
    %c7_i32_32 = arith.constant 7 : i32
    %97 = tpu.dynamic_rotate %96 by %c7_i32_32 dim 0 : vector<8x256xf32>, i32 -> vector<8x256xf32>
    %c1_i32_33 = arith.constant 1 : i32
    %98 = tpu.dynamic_rotate %96 by %c1_i32_33 dim 0 : vector<8x256xf32>, i32 -> vector<8x256xf32>
    %99 = arith.minimumf %96, %97 : vector<8x256xf32>
    %100 = arith.maximumf %96, %98 : vector<8x256xf32>
    %101 = arith.select %50, %100, %96 : vector<8x256xi1>, vector<8x256xf32>
    %102 = arith.select %45, %99, %101 : vector<8x256xi1>, vector<8x256xf32>
    %c7_i32_34 = arith.constant 7 : i32
    %103 = tpu.dynamic_rotate %102 by %c7_i32_34 dim 0 : vector<8x256xf32>, i32 -> vector<8x256xf32>
    %c1_i32_35 = arith.constant 1 : i32
    %104 = tpu.dynamic_rotate %102 by %c1_i32_35 dim 0 : vector<8x256xf32>, i32 -> vector<8x256xf32>
    %105 = arith.minimumf %102, %103 : vector<8x256xf32>
    %106 = arith.maximumf %102, %104 : vector<8x256xf32>
    %107 = arith.select %60, %106, %102 : vector<8x256xi1>, vector<8x256xf32>
    %108 = arith.select %55, %105, %107 : vector<8x256xi1>, vector<8x256xf32>
    %109 = vector.extract_strided_slice %108 {offsets = [3, 0], sizes = [1, 256], strides = [1, 1]} : vector<8x256xf32> to vector<1x256xf32>
    %110 = arith.cmpf one, %20, %20 : vector<8x256xf32>
    %cst_36 = arith.constant 1.000000e+00 : f32
    %cst_37 = arith.constant 0.000000e+00 : f32
    %111 = vector.broadcast %cst_36 : f32 to vector<8x256xf32>
    %112 = vector.broadcast %cst_37 : f32 to vector<8x256xf32>
    %113 = arith.select %110, %111, %112 : vector<8x256xi1>, vector<8x256xf32>
    %cst_38 = arith.constant dense<0.000000e+00> : vector<256xf32>
    %114 = vector.multi_reduction <add>, %113, %cst_38 [0] : vector<8x256xf32> to vector<256xf32>
    %115 = vector.shape_cast %114 : vector<256xf32> to vector<1x256xf32>
    %cst_39 = arith.constant 0.000000e+00 : f32
    %116 = vector.broadcast %cst_39 : f32 to vector<1x256xf32>
    %117 = arith.cmpf ogt, %115, %116 : vector<1x256xf32>
    %cst_40 = arith.constant 0x7FC00000 : f32
    %118 = vector.broadcast %cst_40 : f32 to vector<1x256xf32>
    %119 = arith.select %117, %118, %109 : vector<1x256xi1>, vector<1x256xf32>
    %c0_41 = arith.constant 0 : index
    %c0_42 = arith.constant 0 : index
    %c0_43 = arith.constant 0 : index
    %120 = vector.load %arg3[%c0_41, %c0_42, %c0_43] : memref<1x1x256xf32, #tpu.memory_space<vmem>>, vector<1x1x256xf32>
    %121 = vector.shape_cast %120 : vector<1x1x256xf32> to vector<1x256xf32>
    %122 = vector.shape_cast %119 : vector<1x256xf32> to vector<1x1x256xf32>
    tpu.vector_store %arg3[%c0_41, %c0_42, %c0_43], %122 {strides = array<i32>} : memref<1x1x256xf32, #tpu.memory_space<vmem>>, vector<1x1x256xf32>,
    return
  }
  func.func @transform_0(%arg0: i32) -> (i32, i32, i32) {
    %c0_i32 = arith.constant 0 : i32
    %c0_i32_0 = arith.constant 0 : i32
    %c0_i32_1 = arith.constant 0 : i32
    return %arg0, %c0_i32, %c0_i32_0 : i32, i32, i32
  }
  func.func @transform_1(%arg0: i32) -> (i32, i32) {
    %c0_i32 = arith.constant 0 : i32
    %c0_i32_0 = arith.constant 0 : i32
    %c0_i32_1 = arith.constant 0 : i32
    return %c0_i32, %c0_i32_0 : i32, i32
  }
  func.func @transform_2(%arg0: i32) -> (i32, i32, i32) {
    %c0_i32 = arith.constant 0 : i32
    %c0_i32_0 = arith.constant 0 : i32
    %c0_i32_1 = arith.constant 0 : i32
    return %arg0, %c0_i32, %c0_i32_0 : i32, i32, i32
  }
}

</mosaic_0001>

<llo_original>
// kernel: tpu_custom_call.1
$region0: #{tpu_custom_call.1}
  #allocation0 [shape = 'u32[]', space=smem, size = 0x4, offset = 0x4, fixed_abs, tag = 'smem constant byte address 0x4 - core index']
  #allocation1 [shape = 'u32[144,128]{1,0:T(1,128)}', space=vmem, size = 0x12000, scoped, tag = 'internal scratch']
  %s0 = inlined_call_operand.vmem [shape: f32[2,36,256], index: 0, kind: input, shape index: {}]
  %s1 = inlined_call_operand.vmem [shape: f32[8,36], index: 1, kind: input, shape index: {}]
  %s2 = inlined_call_operand.hbm [shape: f32[2,1,256], index: 2, kind: output, shape index: {}]
  %s3 = sld [smem:[#allocation0]]
  $region41: #{tpu_custom_call.1} parent=0
    _
  %s5 = ssub.s32 1, %s3
  %s6 = scalar_select 0, %s5, %s3
  $region1: #{tpu_custom_call.1} parent=0
    #allocation2 [shape = 'u8[2048]{0}', space=vmem, size = 0x800, scoped, tag = 'output window, operand 0']
    #allocation3 [shape = 's32[2]{0}', space=sflag, size = 0x8, scoped, tag = 'scoped memory for tpu_custom_call.1']
    %7 = vsyncpa [#allocation3], 0
    %s8 = scalar_lea.sflag [#allocation3], 1
    %9 = vsyncpa %s8, 0
    loop: start=0, step=1, limit=4
    $region2: #{tpu_custom_call.1} parent=1 // loop_pre_header
      _
    $region3: #{tpu_custom_call.1} parent=1 // loop_header
      %s11 = sphi 0, %s15
      %p12 = scmp.ge.s32.totalorder %s11, 4
      %s21 = sphi 0, %s23
      %s24 = sphi 0, %s21
      %s25 = sphi 0, %s24
      %s41 = sphi 0, %s25
      %s45 = sphi 0, %s45
      %s47 = sphi 0, %s45
      %s48 = sphi 0, %s47
      %s62 = sphi 0, %s48
      %s68 = sphi 0, %s70
      %s71 = sphi 0, %s68
      %s72 = sphi 0, %s71
      %s88 = sphi 0, %s72
    $region4: #{tpu_custom_call.1} parent=1 // loop_header_branch
      %14 = sbr.rel (%p12) target = $region8
    $region5: #{tpu_custom_call.1} parent=1 // loop_body
      %s16 = ssub.s32 %s11, 1
      %s17 = ssub.s32 %s11, 2
      %s18 = sadd.s32 %s11, 1
      %s19 = ssub.s32 %s11, %s18
      %p20 = scmp.eq.s32.totalorder %s19, 0
      %s22 = sadd.s32 %s21, 1
      %s23 = scalar_select %p20, %s21, %s22
      %p26 = pneg %p20
      %p27 = scmp.eq.s32.totalorder %s11, 1
      %p28 = por %p26, %p27
      %p29 = scmp.ne.s32.totalorder %s21, %s24
      %p30 = scmp.eq.s32.totalorder %s11, 0
      %p31 = por %p29, %p30
      %p32 = scmp.ne.s32.totalorder %s21, %s24
      %p33 = scmp.eq.s32.totalorder %s16, 1
      %p34 = por %p32, %p33
      %p35 = scmp.ne.s32.totalorder %s24, %s25
      %p36 = scmp.eq.s32.totalorder %s16, 0
      %p37 = por %p35, %p36
      %p38 = scmp.ne.s32.totalorder %s24, %s25
      %p39 = scmp.eq.s32.totalorder %s17, 1
      %p40 = por %p38, %p39
      %p42 = scmp.ne.s32.totalorder %s25, %s41
      %p43 = scmp.eq.s32.totalorder %s17, 0
      %p44 = por %p42, %p43
      %s46 = sadd.s32 %s45, 1
      %p49 = scmp.eq.s32.totalorder %s11, 1
      %p50 = scmp.ne.s32.totalorder %s45, %s47
      %p51 = scmp.eq.s32.totalorder %s11, 0
      %p52 = por %p50, %p51
      %p53 = scmp.ne.s32.totalorder %s45, %s47
      %p54 = scmp.eq.s32.totalorder %s16, 1
      %p55 = por %p53, %p54
      %p56 = scmp.ne.s32.totalorder %s47, %s48
      %p57 = scmp.eq.s32.totalorder %s16, 0
      %p58 = por %p56, %p57
      %p59 = scmp.ne.s32.totalorder %s47, %s48
      %p60 = scmp.eq.s32.totalorder %s17, 1
      %p61 = por %p59, %p60
      %p63 = scmp.ne.s32.totalorder %s48, %s62
      %p64 = scmp.eq.s32.totalorder %s17, 0
      %p65 = por %p63, %p64
      %s66 = ssub.s32 %s11, %s18
      %p67 = scmp.eq.s32.totalorder %s66, 0
      %s69 = sadd.s32 %s68, 1
      %s70 = scalar_select %p67, %s68, %s69
      %p73 = pneg %p67
      %p74 = scmp.eq.s32.totalorder %s11, 1
      %p75 = por %p73, %p74
      %p76 = scmp.ne.s32.totalorder %s68, %s71
      %p77 = scmp.eq.s32.totalorder %s11, 0
      %p78 = por %p76, %p77
      %p79 = scmp.ne.s32.totalorder %s68, %s71
      %p80 = scmp.eq.s32.totalorder %s16, 1
      %p81 = por %p79, %p80
      %p82 = scmp.ne.s32.totalorder %s71, %s72
      %p83 = scmp.eq.s32.totalorder %s16, 0
      %p84 = por %p82, %p83
      %p85 = scmp.ne.s32.totalorder %s71, %s72
      %p86 = scmp.eq.s32.totalorder %s17, 1
      %p87 = por %p85, %p86
      %p89 = scmp.ne.s32.totalorder %s72, %s88
      %p90 = scmp.eq.s32.totalorder %s17, 0
      %p91 = por %p89, %p90
      %p92 = scmp.le.s32.totalorder 1, %s11
      %p93 = scmp.lt.s32.totalorder %s11, 3
      %p94 = pnand %p92, %p93
      %p95 = pneg %p94
      // Predicated region
      $region9: #{tpu_custom_call.1} parent=5 // pred_check
        _
      $region10: #{tpu_custom_call.1} parent=5 // pred_check_branch
        %97 = sbr.rel (%p94) target = $region12
      $region11: #{tpu_custom_call.1} parent=5 // pred_region
        %s98 = ssub.s32 %s11, 1
        // Predicated region
        $region13: #{tpu_custom_call.1} parent=11 // pred_check
          %p99 = pneg %p58
        $region14: #{tpu_custom_call.1} parent=11 // pred_check_branch
          %101 = sbr.rel (%p99) target = $region16
        $region15: #{tpu_custom_call.1} parent=11 // pred_region
          _
        $region16: #{tpu_custom_call.1} parent=11 // pred_fallthru
          _
      $region12: #{tpu_custom_call.1} parent=5 // pred_fallthru
        _
      %p102 = scmp.lt.s32.totalorder %s11, 2
      // Predicated region
      $region17: #{tpu_custom_call.1} parent=5 // pred_check
        %p103 = pneg %p102
      $region18: #{tpu_custom_call.1} parent=5 // pred_check_branch
        %105 = sbr.rel (%p103) target = $region20
      $region19: #{tpu_custom_call.1} parent=5 // pred_region
        // Predicated region
        $region21: #{tpu_custom_call.1} parent=19 // pred_check
          %p106 = pneg %p31
        $region22: #{tpu_custom_call.1} parent=19 // pred_check_branch
          %108 = sbr.rel (%p106) target = $region24
        $region23: #{tpu_custom_call.1} parent=19 // pred_region
          %p109 = scmp.lt.s32.totalorder %s11, 1
          %s110 = scalar_select %p109, %s11, 1
          %s111 = smul.addr %s110, 10
          %s112 = smul.addr %s111, 8
          %s113 = scalar_lea.vmem %s0, %s112
        $region24: #{tpu_custom_call.1} parent=19 // pred_fallthru
          _
      $region20: #{tpu_custom_call.1} parent=5 // pred_fallthru
        _
      %p114 = scmp.le.s32.totalorder 1, %s11
      %p115 = scmp.lt.s32.totalorder %s11, 3
      %p116 = pnand %p114, %p115
      %p117 = pneg %p116
      // Predicated region
      $region25: #{tpu_custom_call.1} parent=5 // pred_check
        _
      $region26: #{tpu_custom_call.1} parent=5 // pred_check_branch
        %119 = sbr.rel (%p116) target = $region28
      $region27: #{tpu_custom_call.1} parent=5 // pred_region
        %s120 = ssub.s32 %s11, 1
        %p121 = scmp.lt.s32.totalorder %s16, 1
        %s122 = scalar_select %p121, %s16, 1
        %s123 = smul.addr %s122, 10
        %s124 = smul.addr %s123, 8
        %s125 = scalar_lea.vmem %s0, %s124
        %p126 = pneg %p37
        %p127 = pneg %p34
        %p128 = pneg %p58
        %p129 = pneg %p55
        %p130 = pneg %p84
        %p131 = pneg %p81
        %s132 = sand.u32 %s71, 1
        %s133 = scalar_lea.sflag [#allocation3], %s132
        %s134 = sand.u32 %s71, 1
        %s135 = smul.addr %s134, 2
        %s136 = scalar_lea.vmem [#allocation2], %s135
        %p137 = scmp.lt.s32.totalorder %s16, 1
        %s138 = scalar_select %p137, %s16, 1
        %s139 = smul.addr %s138, 10
        %s140 = smul.addr %s139, 8
        %s141 = scalar_lea.vmem %s0, %s140
        %v142 = vld [vmem:[%s141] sm:$0xff]
        %v143 = vld [vmem:[%s141 + $0x8] sm:$0xff]
        %v144 = vld [vmem:[%s141 + $0x10] sm:$0xff]
        %v145 = vld [vmem:[%s141 + $0x18] sm:$0xff]
        %v146 = vld [vmem:[%s141 + $0x20] sm:$0xff]
        %v147 = vld [vmem:[%s141 + $0x28] sm:$0xff]
        %v148 = vld [vmem:[%s141 + $0x30] sm:$0xff]
        %v149 = vld [vmem:[%s141 + $0x38] sm:$0xff]
        %v150 = vld [vmem:[%s141 + $0x40] sm:$0xf]
        %v151 = vld [vmem:[%s141 + $0x48] sm:$0xf]
        %v152 = vld [vmem:[%s1] sm:$0xff]
        %vm153 = vcmask 293888
        %v155 = vsel %vm153, %v152, 0
        %vm157 = vcmask 1043456
        %v159 = vsel %vm157, %v150, 0
        %v162 = vsel %vm157, %v151, 0
        %164 = vmatprep.subr.mxu0 0.0
        %165 = vmatpush1.msra.mxu0 0.0
        %166 = vmatprep.subr.mxu0 0.0
        %167 = vmatpush1.msra.mxu0 0.0
        %168 = vmatprep.subr.mxu0 0.0
        %169 = vmatpush1.msra.mxu0 0.0
        %170 = vmatprep.subr.mxu0 0.0
        %171 = vmatpush1.msra.mxu0 0.0
        %172 = vmatprep.subr.mxu0 0.0
        %173 = vmatpush1.msra.mxu0 0.0
        %174 = vmatprep.subr.mxu0 0.0
        %175 = vmatpush1.msra.mxu0 0.0
        %176 = vmatprep.subr.mxu0 0.0
        %177 = vmatpush1.msra.mxu0 0.0
        %178 = vmatprep.subr.mxu0 0.0
        %179 = vmatpush1.msra.mxu0 0.0
        %180 = vmatprep.subr.mxu0 0.0
        %181 = vmatpush1.msra.mxu0 0.0
        %182 = vmatprep.subr.mxu0 0.0
        %183 = vmatpush1.msra.mxu0 0.0
        %184 = vmatprep.subr.mxu0 0.0
        %185 = vmatpush1.msra.mxu0 0.0
        %186 = vmatprep.subr.mxu0 %v162
        %187 = vmatpush1.msra.mxu0 %v159
        %188 = vmatprep.subr.mxu0 %v149
        %189 = vmatpush1.msra.mxu0 %v148
        %190 = vmatprep.subr.mxu0 %v147
        %191 = vmatpush1.msra.mxu0 %v146
        %192 = vmatprep.subr.mxu0 %v145
        %193 = vmatpush1.msra.mxu0 %v144
        %194 = vmatprep.subr.mxu0 %v143
        %195 = vmatpush1.msra.mxu0 %v142
        %196 = vmatprep.subr.mxu0 0.0
        %197 = vmatpush2.msra.mxu0 0.0
        %198 = vmatprep.subr.mxu0 0.0
        %199 = vmatpush2.msra.mxu0 0.0
        %200 = vmatprep.subr.mxu0 0.0
        %201 = vmatpush2.msra.mxu0 0.0
        %202 = vmatprep.subr.mxu0 0.0
        %203 = vmatpush2.msra.mxu0 0.0
        %204 = vmatprep.subr.mxu0 0.0
        %205 = vmatpush2.msra.mxu0 0.0
        %206 = vmatprep.subr.mxu0 0.0
        %207 = vmatpush2.msra.mxu0 0.0
        %208 = vmatprep.subr.mxu0 0.0
        %209 = vmatpush2.msra.mxu0 0.0
        %210 = vmatprep.subr.mxu0 0.0
        %211 = vmatpush2.msra.mxu0 0.0
        %212 = vmatprep.subr.mxu0 0.0
        %213 = vmatpush2.msra.mxu0 0.0
        %214 = vmatprep.subr.mxu0 0.0
        %215 = vmatpush2.msra.mxu0 0.0
        %216 = vmatprep.subr.mxu0 0.0
        %217 = vmatpush2.msra.mxu0 0.0
        %218 = vmatprep.subr.mxu0 0.0
        %219 = vmatpush2.msra.mxu0 0.0
        %220 = vmatprep.subr.mxu0 0.0
        %221 = vmatpush2.msra.mxu0 0.0
        %222 = vmatprep.subr.mxu0 0.0
        %223 = vmatpush2.msra.mxu0 0.0
        %224 = vmatprep.subr.mxu0 0.0
        %225 = vmatpush2.msra.mxu0 0.0
        %226 = vmatprep.subr.mxu0 0.0
        %227 = vmatpush2.msra.mxu0 0.0
        %228 = vmatprep.mubr.f32.mxu0 0.0
        %229 = vmatmul.mubr.f32.gmra.mxu0 %v155
        %v230 = vpop.f32.mrf.mxu0
        %v231 = vadd.f32 0.0, %v230
        %v232 = vpop.f32.mrf.mxu0
        %v233 = vadd.f32 0.0, %v232
        %234 = vdwg.mxu0
        %v235 = vadd.f32 %v231, %v233
        %236 = vadd.xlane.f32.xlu0 %v235
        %v237 = vpop.xlane.xlu0 %236
        %v238 = vrcp.pop 256.0
        %v239 = vmul.f32 %v237, %v238
        %v240 = vsub.f32 %v231, %v239
        %v241 = vsub.f32 %v233, %v239
        %v242 = vmul.f32 %v240, %v240
        %v243 = vmul.f32 %v241, %v241
        %v244 = vadd.f32 %v242, %v243
        %245 = vadd.xlane.f32.xlu0 %v244
        %v246 = vpop.xlane.xlu0 %245
        %v247 = vmul.f32 %v246, %v238
        %v248 = vadd.f32 %v247, 1e-05
        %v249 = vrsqrt.pop %v248
        %v250 = vmul.f32 %v240, %v249
        %v251 = vmul.f32 %v241, %v249
        %v252 = vrsqrt.pop %v250
        %v253 = vmul.f32 %v250, %v252
        %vm254 = vcmp.eq.f32.partialorder %v250, inf
        %v255 = vsel %vm254, %v250, %v253
        %vm256 = vcmp.eq.f32.partialorder %v250, 0.0
        %v257 = vand.u32 %v250, 2147483648
        %v258 = vsel %vm256, %v257, %v255
        %v259 = vrsqrt.pop %v251
        %v260 = vmul.f32 %v251, %v259
        %vm261 = vcmp.eq.f32.partialorder %v251, inf
        %v262 = vsel %vm261, %v251, %v260
        %vm263 = vcmp.eq.f32.partialorder %v251, 0.0
        %v264 = vand.u32 %v251, 2147483648
        %v265 = vsel %vm263, %v264, %v262
        %vm266 = vcmp.ne.f32.partialorder %v258, %v258
        %vm267 = vcmp.ne.f32.partialorder %v265, %v265
        %v268 = vsel %vm266, inf, %v258
        %v269 = vsel %vm267, inf, %v265
        %v270 = vlaneseq
        %v271 = vshrl.u32 %v270, 7
        %vm272 = vcmp.lt.s32.totalorder %v271, 0
        %v273 = vsub.s32 0, %v271
        %v274 = vsel %vm272, %v273, %v271
        %v275 = vshrl.u32 %v274, 1
        %v276 = vand.u32 %v274, 1
        %v277 = vsub.s32 0, %v276
        %v278 = vsel %vm272, %v277, %v276
        %vm279 = vcmp.ne.s32.totalorder %v278, 0
        %vm280 = vcmp.lt.s32.totalorder %v278, 0
        %vm281 = vmand %vm280, %vm279
        %v282 = vadd.s32 %v278, 2
        %v283 = vsel %vm281, %v282, %v278
        %vm284 = vcmp.eq.s32.totalorder %v283, 0
        %vm285 = vcmp.lt.s32.totalorder %v271, 7
        %vm286 = vmand %vm284, %vm285
        %vm287 = vcmp.eq.s32.totalorder %v283, 1
        %vm288 = vcmp.gt.s32.totalorder %v271, 0
        %vm289 = vmand %vm287, %vm288
        %vm290 = vmand %vm287, %vm285
        %vm291 = vmand %vm284, %vm288
        %v292 = vrot.slane %v268, 1
        %v293 = vrot.slane %v269, 1
        %v294 = vrot.slane %v268, 7
        %v295 = vrot.slane %v269, 7
        %v296 = vmin.f32 %v268, %v292
        %v297 = vmin.f32 %v269, %v293
        %v298 = vmax.f32 %v268, %v294
        %v299 = vmax.f32 %v269, %v295
        %v300 = vsel %vm289, %v298, %v268
        %v301 = vsel %vm289, %v299, %v269
        %v302 = vsel %vm286, %v296, %v300
        %v303 = vsel %vm286, %v297, %v301
        %v304 = vrot.slane %v302, 1
        %v305 = vrot.slane %v303, 1
        %v306 = vrot.slane %v302, 7
        %v307 = vrot.slane %v303, 7
        %v308 = vmin.f32 %v302, %v304
        %v309 = vmin.f32 %v303, %v305
        %v310 = vmax.f32 %v302, %v306
        %v311 = vmax.f32 %v303, %v307
        %v312 = vsel %vm291, %v310, %v302
        %v313 = vsel %vm291, %v311, %v303
        %v314 = vsel %vm290, %v308, %v312
        %v315 = vsel %vm290, %v309, %v313
        %v316 = vrot.slane %v314, 1
        %v317 = vrot.slane %v315, 1
        %v318 = vrot.slane %v314, 7
        %v319 = vrot.slane %v315, 7
        %v320 = vmin.f32 %v314, %v316
        %v321 = vmin.f32 %v315, %v317
        %v322 = vmax.f32 %v314, %v318
        %v323 = vmax.f32 %v315, %v319
        %v324 = vsel %vm289, %v322, %v314
        %v325 = vsel %vm289, %v323, %v315
        %v326 = vsel %vm286, %v320, %v324
        %v327 = vsel %vm286, %v321, %v325
        %v328 = vrot.slane %v326, 1
        %v329 = vrot.slane %v327, 1
        %v330 = vrot.slane %v326, 7
        %v331 = vrot.slane %v327, 7
        %v332 = vmin.f32 %v326, %v328
        %v333 = vmin.f32 %v327, %v329
        %v334 = vmax.f32 %v326, %v330
        %v335 = vmax.f32 %v327, %v331
        %v336 = vsel %vm291, %v334, %v326
        %v337 = vsel %vm291, %v335, %v327
        %v338 = vsel %vm290, %v332, %v336
        %v339 = vsel %vm290, %v333, %v337
        %v340 = vrot.slane %v338, 1
        %v341 = vrot.slane %v339, 1
        %v342 = vrot.slane %v338, 7
        %v343 = vrot.slane %v339, 7
        %v344 = vmin.f32 %v338, %v340
        %v345 = vmin.f32 %v339, %v341
        %v346 = vmax.f32 %v338, %v342
        %v347 = vmax.f32 %v339, %v343
        %v348 = vsel %vm289, %v346, %v338
        %v349 = vsel %vm289, %v347, %v339
        %v350 = vsel %vm286, %v344, %v348
        %v351 = vsel %vm286, %v345, %v349
        %v352 = vrot.slane %v350, 1
        %v353 = vrot.slane %v351, 1
        %v354 = vrot.slane %v350, 7
        %v355 = vrot.slane %v351, 7
        %v356 = vmin.f32 %v350, %v352
        %v357 = vmin.f32 %v351, %v353
        %v358 = vmax.f32 %v350, %v354
        %v359 = vmax.f32 %v351, %v355
        %v360 = vsel %vm291, %v358, %v350
        %v361 = vsel %vm291, %v359, %v351
        %v362 = vsel %vm290, %v356, %v360
        %v363 = vsel %vm290, %v357, %v361
        %v364 = vrot.slane %v362, 1
        %v365 = vrot.slane %v363, 1
        %v366 = vrot.slane %v362, 7
        %v367 = vrot.slane %v363, 7
        %v368 = vmin.f32 %v362, %v364
        %v369 = vmin.f32 %v363, %v365
        %v370 = vmax.f32 %v362, %v366
        %v371 = vmax.f32 %v363, %v367
        %v372 = vsel %vm289, %v370, %v362
        %v373 = vsel %vm289, %v371, %v363
        %v374 = vsel %vm286, %v368, %v372
        %v375 = vsel %vm286, %v369, %v373
        %v376 = vrot.slane %v374, 1
        %v377 = vrot.slane %v375, 1
        %v378 = vrot.slane %v374, 7
        %v379 = vrot.slane %v375, 7
        %v380 = vmin.f32 %v374, %v376
        %v381 = vmin.f32 %v375, %v377
        %v382 = vmax.f32 %v374, %v378
        %v383 = vmax.f32 %v375, %v379
        %v384 = vsel %vm291, %v382, %v374
        %v385 = vsel %vm291, %v383, %v375
        %v386 = vsel %vm290, %v380, %v384
        %v387 = vsel %vm290, %v381, %v385
        %v388 = vsel %vm266, 1.0, 0.0
        %v389 = vsel %vm267, 1.0, 0.0
        %v390 = vrot.slane %v388, 4
        %v391 = vadd.f32 %v388, %v390
        %v392 = vrot.slane %v391, 2
        %v393 = vadd.f32 %v391, %v392
        %v394 = vrot.slane %v393, 1
        %v395 = vadd.f32 %v393, %v394
        %v396 = vrot.slane %v389, 4
        %v397 = vadd.f32 %v389, %v396
        %v398 = vrot.slane %v397, 2
        %v399 = vadd.f32 %v397, %v398
        %v400 = vrot.slane %v399, 1
        %v401 = vadd.f32 %v399, %v400
        %vm402 = vcmp.gt.f32.partialorder %v395, 0.0
        %vm403 = vcmp.gt.f32.partialorder %v401, 0.0
        %v404 = vsel %vm402, nan, %v386
        %v405 = vsel %vm403, nan, %v387
        %v408 = vcombine.low %v404, %v405
        %v410 = vunpack.c.l.s4 1966171168
        %v411 = vunpack.c.0.s8 %v410
        %v412 = vlaneseq
        %v413 = vshrl.u32 %v412, 7
        %v414 = vsub.s32 %v411, %v413
        %v415 = vrot.slane %v408, %v414
        %v416 = vcombine.high %v415, %v415
        %v418 = vunpack.c.l.s4 1966171168
        %v419 = vunpack.c.0.s8 %v418
        %v420 = vlaneseq
        %v421 = vshrl.u32 %v420, 7
        %v422 = vsub.s32 %v419, %v421
        %v423 = vrot.slane %v416, %v422
        %v424 = vcombine.high %v423, %v423
        %v426 = vlaneseq
        %vm427 = vcmp.ge.s32.totalorder %v426, 0
        %vm428 = vcmp.lt.s32.totalorder %v426, 256
        %vm429 = vmand %vm427, %vm428
        %430 = vst.msk [vmem:[%s136] sm:$0x3] %vm429, %v424
        %s431 = sand.u32 %s71, 1
        %s432 = scalar_lea.sflag [#allocation3], %s431
        %s433 = sand.u32 %s71, 1
        %s434 = smul.addr %s433, 2
        %s435 = scalar_lea.vmem [#allocation2], %s434
        // Predicated region
        $region29: #{tpu_custom_call.1} parent=27 // pred_check
          %p436 = pneg %p81
        $region30: #{tpu_custom_call.1} parent=27 // pred_check_branch
          %438 = sbr.rel (%p436) target = $region32
        $region31: #{tpu_custom_call.1} parent=27 // pred_region
          %s440 = ssub.s32 32, 32
          %441 = vsyncadd %s432, %s440
          %s442 = smul.addr %s16, 2
          %s443 = smul.addr %s442, 16
          %s444 = scalar_lea.hbm %s2, %s443
          %s446 = sshll.u32 %s435, 4
          %s447 = int_to_ptr.vmem [resolvable:$true] %s446
          %449 = dma.vmem_to_hbm [thread:$0]  %s447, 32, %s444, %s432
        $region32: #{tpu_custom_call.1} parent=27 // pred_fallthru
          _
      $region28: #{tpu_custom_call.1} parent=5 // pred_fallthru
        _
      %p450 = scmp.le.s32.totalorder 2, %s11
      // Predicated region
      $region33: #{tpu_custom_call.1} parent=5 // pred_check
        %p451 = pneg %p450
      $region34: #{tpu_custom_call.1} parent=5 // pred_check_branch
        %453 = sbr.rel (%p451) target = $region36
      $region35: #{tpu_custom_call.1} parent=5 // pred_region
        %s454 = ssub.s32 %s11, 2
        // Predicated region
        $region37: #{tpu_custom_call.1} parent=35 // pred_check
          %p455 = pneg %p87
        $region38: #{tpu_custom_call.1} parent=35 // pred_check_branch
          %457 = sbr.rel (%p455) target = $region40
        $region39: #{tpu_custom_call.1} parent=35 // pred_region
          %s458 = sand.u32 %s72, 1
          %s459 = scalar_lea.sflag [#allocation3], %s458
          %s460 = sand.u32 %s72, 1
          %s461 = smul.addr %s460, 2
          %s462 = scalar_lea.vmem [#allocation2], %s461
          %463 = dma.done %s459, 32
        $region40: #{tpu_custom_call.1} parent=35 // pred_fallthru
          _
      $region36: #{tpu_custom_call.1} parent=5 // pred_fallthru
        _
    $region6: #{tpu_custom_call.1} parent=1 // loop_footer
      %s15 = sadd.s32 1, %s11
    $region7: #{tpu_custom_call.1} parent=1 // loop_footer_branch
      %10 = sbr.rel target = $region3
    $region8: #{tpu_custom_call.1} parent=1 // loop_exit
      _
    %464 = vsyncpa [#allocation3], 1
    %s465 = scalar_lea.sflag [#allocation3], 1
    %466 = vsyncpa %s465, 1

</llo_original>
